<compile_context>
chip_gen: v6e
topology: v6e:2x2x1
jax: 0.10.0
libtpu: 0.0.40
codegen_flags: <defaults>
</compile_context>

<pallas_src>
import functools

import jax
import jax.numpy as jnp
from jax import lax
from jax.experimental import pallas as pl
from jax.experimental.pallas import tpu as pltpu


def _bce_dice_partial_kernel(pwm1_ref, x_ref, y_ref,
                             bce_ref, inter_ref, union_ref,
                             *, n_cols, tile_n, need_mask):
    # pwm1_ref:  SMEM (1,) f32  -- (pos_weight - 1), scalar-prefetched
    # x_ref:     VMEM (TB, TN)  -- logits tile (native dtype)
    # y_ref:     VMEM (TB, TN)  -- target tile (native dtype)
    # bce_ref, inter_ref, union_ref: VMEM (TB, 1) f32 -- per-row accumulators
    #   (output block index is constant over j -> resident accumulator).
    j = pl.program_id(1)

    @pl.when(j == 0)
    def _():
        bce_ref[...] = jnp.zeros_like(bce_ref)
        inter_ref[...] = jnp.zeros_like(inter_ref)
        union_ref[...] = jnp.zeros_like(union_ref)

    pw_m1 = pwm1_ref[0]

    def accumulate(masked):
        x = x_ref[...].astype(jnp.float32)
        y = y_ref[...].astype(jnp.float32)
        if masked:
            col = j * tile_n + lax.broadcasted_iota(jnp.int32, x.shape, 1)
            mask = col < n_cols
            # Sanitize y so padded lanes never reach the union/inter sums.
            y = jnp.where(mask, y, 0.0)

        # Shared transcendentals: exp(-|x|), log1p, exp -> 3 EUP ops/elem.
        e = jnp.exp(-jnp.abs(x))
        sp_neg_x = jnp.maximum(-x, 0.0) + jnp.log1p(e)        # softplus(-x)
        # BCEWithLogitsLoss (reduction='none'), numerically stable:
        #   loss = (1 - y) * x + (1 + (pw - 1) * y) * softplus(-x)
        bce = (1.0 - y) * x + (1.0 + pw_m1 * y) * sp_neg_x
        # sigmoid(x) = exp(-softplus(-x))  (stable for all x, no divide)
        p = jnp.exp(-sp_neg_x)

        if masked:
            bce = jnp.where(mask, bce, 0.0)
            p = jnp.where(mask, p, 0.0)

        bce_ref[...] += jnp.sum(bce, axis=1, keepdims=True)
        inter_ref[...] += jnp.sum(p * y, axis=1, keepdims=True)
        union_ref[...] += jnp.sum(p + y, axis=1, keepdims=True)

    if need_mask:
        nj = pl.num_programs(1)

        @pl.when(j < nj - 1)          # hot path: no mask work
        def _():
            accumulate(False)

        @pl.when(j == nj - 1)         # cold path: only the ragged tail tile
        def _():
            accumulate(True)
    else:
        accumulate(False)


def _choose_fold(batch, n):
    """Pick S | n so (batch*S, n/S) fills sublanes and gives >= 2 row blocks."""
    if batch >= 16:
        return 1
    best_s, best_score = 1, -1
    s = 1
    while s <= 64 and s <= n:
        if n % s == 0:
            rows, cols = batch * s, n // s
            score = 0
            if cols % 128 == 0:
                score += 4                    # lane-dense
            elif cols >= 128:
                score += 2
            if rows % 8 == 0:
                score += 4                    # sublane-full
            elif rows >= 8:
                score += 2
            if rows >= 16:
                score += 3                    # >= 2 TB=8 blocks (v7x megacore)
            if score > best_score:            # ties keep the smaller S
                best_score, best_s = score, s
        s += 1
    return best_s


def _choose_tn(cols, tb, itemsize, max_tn=None):
    """Lane-tile width. Prefer no-mask configurations; ~4 MiB per input tile."""
    budget_bytes = 4 * 1024 * 1024            # 2 inputs x 2 buffers ~= 16 MiB
    cap = max(128, (budget_bytes // (tb * itemsize)) // 128 * 128)
    if max_tn is not None:                    # testing knob (multiple of 128)
        cap = max(128, min(cap, (max_tn // 128) * 128))
    if cols <= cap:
        return cols                           # one lane tile, no mask needed
    t = cap
    while t >= 128:                           # multiple-of-128 divisor -> no mask
        if cols % t == 0:
            return t
        t -= 128
    return cap                                # ragged tail; masked on last tile only


def bce_and_dice_loss(logits, target, pos_weight=None, reduction="mean", *,
                      _max_tn=None):
    """Mirrors BCEandDiceLoss.forward for NCHW (or any >=2-D) inputs."""
    if logits.shape != target.shape:
        raise ValueError("logits and target must have the same shape")
    B = logits.shape[0]
    N = 1
    for d in logits.shape[1:]:
        N *= int(d)

    if pos_weight is None:
        pw = jnp.float32(1.0)
    else:
        pw_arr = jnp.asarray(pos_weight, dtype=jnp.float32)
        if pw_arr.size != 1:
            # TODO(synk): per-channel (C,) pos_weight needs a per-lane channel
            # index inside the kernel; only a scalar pos_weight is supported.
            raise NotImplementedError("only a scalar pos_weight is supported")
        pw = jnp.reshape(pw_arr, ())
    pw_m1 = jnp.reshape(pw - 1.0, (1,))       # fold (pw - 1) once in the wrapper

    # Fold small batches into the sublane axis: (B, N) -> (B*S, N/S).
    S = _choose_fold(B, N)
    R, cols = B * S, N // S
    x2d = jnp.reshape(logits, (R, cols))      # native dtype; cast per-tile in-kernel
    y2d = jnp.reshape(target, (R, cols))

    if R <= 8:
        TB = R
    elif R < 32:
        TB = 8
    else:
        TB = 16 if R < 128 else 32

    itemsize = max(jnp.dtype(x2d.dtype).itemsize, jnp.dtype(y2d.dtype).itemsize)
    TN = _choose_tn(cols, TB, itemsize, _max_tn)
    nb = pl.cdiv(R, TB)
    nn = pl.cdiv(cols, TN)
    need_mask = (cols % TN) != 0

    kernel = functools.partial(_bce_dice_partial_kernel,
                               n_cols=cols, tile_n=TN, need_mask=need_mask)

    bytes_in = R * cols * (jnp.dtype(x2d.dtype).itemsize
                           + jnp.dtype(y2d.dtype).itemsize)
    cost = pl.CostEstimate(
        flops=int(14 * R * cols),
        transcendentals=int(3 * R * cols),
        bytes_accessed=int(bytes_in + 3 * R * 4),
    )

    bce_p, inter_p, union_p = pl.pallas_call(
        kernel,
        out_shape=(jax.ShapeDtypeStruct((R, 1), jnp.float32),
                   jax.ShapeDtypeStruct((R, 1), jnp.float32),
                   jax.ShapeDtypeStruct((R, 1), jnp.float32)),
        grid_spec=pltpu.PrefetchScalarGridSpec(
            num_scalar_prefetch=1,            # (pos_weight - 1) -> SMEM
            grid=(nb, nn),
            in_specs=[
                pl.BlockSpec((TB, TN), lambda i, j, pw: (i, j)),
                pl.BlockSpec((TB, TN), lambda i, j, pw: (i, j)),
            ],
            out_specs=(
                pl.BlockSpec((TB, 1), lambda i, j, pw: (i, 0)),
                pl.BlockSpec((TB, 1), lambda i, j, pw: (i, 0)),
                pl.BlockSpec((TB, 1), lambda i, j, pw: (i, 0)),
            ),
        ),
        compiler_params=pltpu.CompilerParams(
            dimension_semantics=("parallel", "arbitrary"),
            vmem_limit_bytes=32 * 1024 * 1024,
        ),
        cost_estimate=cost,
    )(pw_m1, x2d, y2d)

    # Combine the S pseudo-row partials back into per-sample sums (tiny ops).
    bce_sum = jnp.sum(jnp.reshape(bce_p, (B, S)), axis=1)
    inter = jnp.sum(jnp.reshape(inter_p, (B, S)), axis=1)
    union = jnp.sum(jnp.reshape(union_p, (B, S)), axis=1)

    smooth = 1.0
    loss = bce_sum / float(N) + 1.0 - (2.0 * inter + smooth) / (union + smooth)

    if reduction == "mean":
        return jnp.mean(loss)
    elif reduction == "sum":
        return jnp.sum(loss)
    return loss


def _reference(logits, target, pos_weight=1.0, reduction="mean"):
    """Plain-JAX reference of the PyTorch module (for a sanity check)."""
    B = logits.shape[0]
    x = jnp.reshape(logits, (B, -1)).astype(jnp.float32)
    y = jnp.reshape(target, (B, -1)).astype(jnp.float32)
    sp = jnp.maximum(-x, 0.0) + jnp.log1p(jnp.exp(-jnp.abs(x)))
    bce = (1.0 - y) * x + (1.0 + (pos_weight - 1.0) * y) * sp
    bce_mean = jnp.mean(bce, axis=1)
    p = jax.nn.sigmoid(x)
    inter = jnp.sum(p * y, axis=1)
    union = jnp.sum(p, axis=1) + jnp.sum(y, axis=1)
    loss = bce_mean + (1.0 - (2.0 * inter + 1.0) / (union + 1.0))
    if reduction == "mean":
        return jnp.mean(loss)
    elif reduction == "sum":
        return jnp.sum(loss)
    return loss


if __name__ == "__main__":
    key = jax.random.PRNGKey(0)
    k1, k2, k3, k4, k5, k6 = jax.random.split(key, 6)

    # Case 1: (2, 4, 16, 16), N=1024 -> folds to (16, 128); no mask, 2 row blocks.
    logits = jax.random.normal(k1, (2, 4, 16, 16), dtype=jnp.float32)
    target = (jax.random.uniform(k2, (2, 4, 16, 16)) > 0.5).astype(jnp.float32)
    loss = jax.block_until_ready(bce_and_dice_loss(logits, target))
    ref = _reference(logits, target)
    assert jnp.allclose(loss, ref, rtol=1e-5, atol=1e-5), (loss, ref)

    # Case 2: (2, 3, 10, 10), N=300 (no multiple-of-128 divisor) + pos_weight.
    logits2 = jax.random.normal(k3, (2, 3, 10, 10), dtype=jnp.float32)
    target2 = (jax.random.uniform(k4, (2, 3, 10, 10)) > 0.5).astype(jnp.float32)
    loss2 = jax.block_until_ready(
        bce_and_dice_loss(logits2, target2, pos_weight=2.0))
    ref2 = _reference(logits2, target2, pos_weight=2.0)
    assert jnp.allclose(loss2, ref2, rtol=1e-5, atol=1e-5), (loss2, ref2)

    # Case 3: force TN=128 so the pl.when-gated ragged-tail mask path runs
    # (folds to (16, 320) -> 3 lane tiles, last one masked); reduction='none'.
    logits3 = jax.random.normal(k5, (4, 4, 16, 20), dtype=jnp.float32)
    target3 = (jax.random.uniform(k6, (4, 4, 16, 20)) > 0.5).astype(jnp.float32)
    loss3 = jax.block_until_ready(
        bce_and_dice_loss(logits3, target3, pos_weight=0.5, reduction="none",
                          _max_tn=128))
    ref3 = _reference(logits3, target3, pos_weight=0.5, reduction="none")
    assert jnp.allclose(loss3, ref3, rtol=1e-5, atol=1e-5), (loss3, ref3)

    print("KERNEL_OK")
</pallas_src>

<mosaic_0001>
module attributes {stable_mosaic.version = 11 : i64} {
  func.func @_bce_dice_partial_kernel(%arg0: i32, %arg1: i32, %arg2: memref<1xf32, #tpu.memory_space<smem>>, %arg3: memref<8x128xf32, #tpu.memory_space<vmem>>, %arg4: memref<8x128xf32, #tpu.memory_space<vmem>>, %arg5: memref<8x1xf32, #tpu.memory_space<vmem>>, %arg6: memref<8x1xf32, #tpu.memory_space<vmem>>, %arg7: memref<8x1xf32, #tpu.memory_space<vmem>>) attributes {dimension_semantics = [#tpu.dimension_semantics<parallel>, #tpu.dimension_semantics<arbitrary>], iteration_bounds = array<i64: 2, 1>, scalar_prefetch = 1 : i64, scratch_operands = 0 : i64, tpu.core_type = #tpu.core_type<tc>, window_params = [{transform_indices = @transform_0, window_bounds = array<i64: 8, 128>}, {transform_indices = @transform_1, window_bounds = array<i64: 8, 128>}, {transform_indices = @transform_2, window_bounds = array<i64: 8, 1>}, {transform_indices = @transform_3, window_bounds = array<i64: 8, 1>}, {transform_indices = @transform_4, window_bounds = array<i64: 8, 1>}]} {
    %c0_i32 = arith.constant 0 : i32
    %0 = arith.cmpi eq, %arg1, %c0_i32 : i32
    %1 = arith.extui %0 : i1 to i32
    %c0_i32_0 = arith.constant 0 : i32
    %2 = arith.cmpi ne, %1, %c0_i32_0 : i32
    scf.if %2 {
      %cst_25 = arith.constant 0.000000e+00 : f32
      %45 = vector.broadcast %cst_25 : f32 to vector<8x1xf32>
      %c0_26 = arith.constant 0 : index
      %c0_27 = arith.constant 0 : index
      %46 = vector.load %arg5[%c0_26, %c0_27] : memref<8x1xf32, #tpu.memory_space<vmem>>, vector<8x1xf32>
      tpu.vector_store %arg5[%c0_26, %c0_27], %45 {strides = array<i32>} : memref<8x1xf32, #tpu.memory_space<vmem>>, vector<8x1xf32>,
      %cst_28 = arith.constant 0.000000e+00 : f32
      %47 = vector.broadcast %cst_28 : f32 to vector<8x1xf32>
      %c0_29 = arith.constant 0 : index
      %c0_30 = arith.constant 0 : index
      %48 = vector.load %arg6[%c0_29, %c0_30] : memref<8x1xf32, #tpu.memory_space<vmem>>, vector<8x1xf32>
      tpu.vector_store %arg6[%c0_29, %c0_30], %47 {strides = array<i32>} : memref<8x1xf32, #tpu.memory_space<vmem>>, vector<8x1xf32>,
      %cst_31 = arith.constant 0.000000e+00 : f32
      %49 = vector.broadcast %cst_31 : f32 to vector<8x1xf32>
      %c0_32 = arith.constant 0 : index
      %c0_33 = arith.constant 0 : index
      %50 = vector.load %arg7[%c0_32, %c0_33] : memref<8x1xf32, #tpu.memory_space<vmem>>, vector<8x1xf32>
      tpu.vector_store %arg7[%c0_32, %c0_33], %49 {strides = array<i32>} : memref<8x1xf32, #tpu.memory_space<vmem>>, vector<8x1xf32>,
    } else {
    }
    %c0 = arith.constant 0 : index
    %3 = memref.load %arg2[%c0] : memref<1xf32, #tpu.memory_space<smem>>
    %c0_1 = arith.constant 0 : index
    %c0_2 = arith.constant 0 : index
    %4 = vector.load %arg3[%c0_1, %c0_2] : memref<8x128xf32, #tpu.memory_space<vmem>>, vector<8x128xf32>
    %c0_3 = arith.constant 0 : index
    %c0_4 = arith.constant 0 : index
    %5 = vector.load %arg4[%c0_3, %c0_4] : memref<8x128xf32, #tpu.memory_space<vmem>>, vector<8x128xf32>
    %6 = math.absf %4 : vector<8x128xf32>
    %cst = arith.constant 0.000000e+00 : f32
    %7 = vector.broadcast %cst : f32 to vector<8x128xf32>
    %8 = arith.subf %7, %6 : vector<8x128xf32>
    %9 = math.exp %8 : vector<8x128xf32>
    %cst_5 = arith.constant 0.000000e+00 : f32
    %10 = vector.broadcast %cst_5 : f32 to vector<8x128xf32>
    %11 = arith.subf %10, %4 : vector<8x128xf32>
    %cst_6 = arith.constant 0.000000e+00 : f32
    %12 = vector.broadcast %cst_6 : f32 to vector<8x128xf32>
    %13 = arith.maximumf %11, %12 : vector<8x128xf32>
    %14 = math.log1p %9 : vector<8x128xf32>
    %15 = arith.addf %13, %14 : vector<8x128xf32>
    %cst_7 = arith.constant 1.000000e+00 : f32
    %16 = vector.broadcast %cst_7 : f32 to vector<8x128xf32>
    %17 = arith.subf %16, %5 : vector<8x128xf32>
    %18 = arith.mulf %17, %4 : vector<8x128xf32>
    %19 = vector.broadcast %3 : f32 to vector<8x128xf32>
    %20 = arith.mulf %19, %5 : vector<8x128xf32>
    %cst_8 = arith.constant 1.000000e+00 : f32
    %21 = vector.broadcast %cst_8 : f32 to vector<8x128xf32>
    %22 = arith.addf %21, %20 : vector<8x128xf32>
    %23 = arith.mulf %22, %15 : vector<8x128xf32>
    %24 = arith.addf %18, %23 : vector<8x128xf32>
    %cst_9 = arith.constant 0.000000e+00 : f32
    %25 = vector.broadcast %cst_9 : f32 to vector<8x128xf32>
    %26 = arith.subf %25, %15 : vector<8x128xf32>
    %27 = math.exp %26 : vector<8x128xf32>
    %c0_10 = arith.constant 0 : index
    %c0_11 = arith.constant 0 : index
    %28 = vector.load %arg5[%c0_10, %c0_11] : memref<8x1xf32, #tpu.memory_space<vmem>>, vector<8x1xf32>
    %cst_12 = arith.constant dense<0.000000e+00> : vector<8xf32>
    %29 = vector.multi_reduction <add>, %24, %cst_12 [1] : vector<8x128xf32> to vector<8xf32>
    %30 = vector.shape_cast %29 : vector<8xf32> to vector<8x1xf32>
    %31 = arith.addf %28, %30 : vector<8x1xf32>
    %c0_13 = arith.constant 0 : index
    %c0_14 = arith.constant 0 : index
    %32 = vector.load %arg5[%c0_13, %c0_14] : memref<8x1xf32, #tpu.memory_space<vmem>>, vector<8x1xf32>
    tpu.vector_store %arg5[%c0_13, %c0_14], %31 {strides = array<i32>} : memref<8x1xf32, #tpu.memory_space<vmem>>, vector<8x1xf32>,
    %c0_15 = arith.constant 0 : index
    %c0_16 = arith.constant 0 : index
    %33 = vector.load %arg6[%c0_15, %c0_16] : memref<8x1xf32, #tpu.memory_space<vmem>>, vector<8x1xf32>
    %34 = arith.mulf %27, %5 : vector<8x128xf32>
    %cst_17 = arith.constant dense<0.000000e+00> : vector<8xf32>
    %35 = vector.multi_reduction <add>, %34, %cst_17 [1] : vector<8x128xf32> to vector<8xf32>
    %36 = vector.shape_cast %35 : vector<8xf32> to vector<8x1xf32>
    %37 = arith.addf %33, %36 : vector<8x1xf32>
    %c0_18 = arith.constant 0 : index
    %c0_19 = arith.constant 0 : index
    %38 = vector.load %arg6[%c0_18, %c0_19] : memref<8x1xf32, #tpu.memory_space<vmem>>, vector<8x1xf32>
    tpu.vector_store %arg6[%c0_18, %c0_19], %37 {strides = array<i32>} : memref<8x1xf32, #tpu.memory_space<vmem>>, vector<8x1xf32>,
    %c0_20 = arith.constant 0 : index
    %c0_21 = arith.constant 0 : index
    %39 = vector.load %arg7[%c0_20, %c0_21] : memref<8x1xf32, #tpu.memory_space<vmem>>, vector<8x1xf32>
    %40 = arith.addf %27, %5 : vector<8x128xf32>
    %cst_22 = arith.constant dense<0.000000e+00> : vector<8xf32>
    %41 = vector.multi_reduction <add>, %40, %cst_22 [1] : vector<8x128xf32> to vector<8xf32>
    %42 = vector.shape_cast %41 : vector<8xf32> to vector<8x1xf32>
    %43 = arith.addf %39, %42 : vector<8x1xf32>
    %c0_23 = arith.constant 0 : index
    %c0_24 = arith.constant 0 : index
    %44 = vector.load %arg7[%c0_23, %c0_24] : memref<8x1xf32, #tpu.memory_space<vmem>>, vector<8x1xf32>
    tpu.vector_store %arg7[%c0_23, %c0_24], %43 {strides = array<i32>} : memref<8x1xf32, #tpu.memory_space<vmem>>, vector<8x1xf32>,
    return
  }
  func.func @transform_0(%arg0: i32, %arg1: i32, %arg2: memref<1xf32, #tpu.memory_space<smem>>) -> (i32, i32) {
    %c0_i32 = arith.constant 0 : i32
    return %arg0, %arg1 : i32, i32
  }
  func.func @transform_1(%arg0: i32, %arg1: i32, %arg2: memref<1xf32, #tpu.memory_space<smem>>) -> (i32, i32) {
    %c0_i32 = arith.constant 0 : i32
    return %arg0, %arg1 : i32, i32
  }
  func.func @transform_2(%arg0: i32, %arg1: i32, %arg2: memref<1xf32, #tpu.memory_space<smem>>) -> (i32, i32) {
    %c0_i32 = arith.constant 0 : i32
    %c0_i32_0 = arith.constant 0 : i32
    return %arg0, %c0_i32 : i32, i32
  }
  func.func @transform_3(%arg0: i32, %arg1: i32, %arg2: memref<1xf32, #tpu.memory_space<smem>>) -> (i32, i32) {
    %c0_i32 = arith.constant 0 : i32
    %c0_i32_0 = arith.constant 0 : i32
    return %arg0, %c0_i32 : i32, i32
  }
  func.func @transform_4(%arg0: i32, %arg1: i32, %arg2: memref<1xf32, #tpu.memory_space<smem>>) -> (i32, i32) {
    %c0_i32 = arith.constant 0 : i32
    %c0_i32_0 = arith.constant 0 : i32
    return %arg0, %c0_i32 : i32, i32
  }
}

</mosaic_0001>

<llo_original>
// kernel: tpu_custom_call.1
$region0: #{tpu_custom_call.1}
  #allocation0 [shape = 'u32[]', space=smem, size = 0x4, offset = 0x4, fixed_abs, tag = 'smem constant byte address 0x4 - core index']
  #allocation1 [shape = 'u32[144,128]{1,0:T(1,128)}', space=vmem, size = 0x12000, scoped, tag = 'internal scratch']
  #allocation2 [shape = 's32[1]{0}', space=sflag, size = 0x4, scoped, tag = 'scoped memory for tpu_custom_call.1']
  #allocation3 [shape = 'f32[1]{0:T(128)S(6)}', space=smem, size = 0x200, scoped, tag = 'prefetched SMEM operand 0']
  %s0 = inlined_call_operand.<no memory space> [shape: f32[1], index: 0, kind: input, shape index: {}]
  %s1 = inlined_call_operand.hbm [shape: f32[16,128], index: 1, kind: input, shape index: {}]
  %s2 = inlined_call_operand.hbm [shape: f32[16,128], index: 2, kind: input, shape index: {}]
  %s3 = inlined_call_operand.vmem [shape: f32[16,1], index: 3, kind: output, shape index: {0}]
  %s4 = inlined_call_operand.vmem [shape: f32[16,1], index: 4, kind: output, shape index: {1}]
  %s5 = inlined_call_operand.vmem [shape: f32[16,1], index: 5, kind: output, shape index: {2}]
  %6 = xla_tuple %s3, %s4, %s5
  %s7 = sld [smem:[#allocation0]]
  $region69: #{tpu_custom_call.1} parent=0
    _
  %s9 = ssub.s32 1, %s7
  %s10 = scalar_select 0, %s9, %s7
  %11 = sst [smem:[#allocation3]] %s0
  $region1: #{tpu_custom_call.1} parent=0
    #allocation4 [shape = 'u8[8192]{0}', space=vmem, size = 0x2000, scoped, tag = 'input window, operand 1']
    #allocation5 [shape = 's32[2]{0}', space=sflag, size = 0x8, scoped, tag = 'scoped memory for tpu_custom_call.1']
    #allocation6 [shape = 'u8[8192]{0}', space=vmem, size = 0x2000, scoped, tag = 'input window, operand 2']
    #allocation7 [shape = 's32[2]{0}', space=sflag, size = 0x8, scoped, tag = 'scoped memory for tpu_custom_call.1']
    %12 = vsyncpa [#allocation5], 0
    %s13 = scalar_lea.sflag [#allocation5], 1
    %14 = vsyncpa %s13, 0
    %15 = vsyncpa [#allocation7], 0
    %s16 = scalar_lea.sflag [#allocation7], 1
    %17 = vsyncpa %s16, 0
    loop: start=0, step=1, limit=4
    $region2: #{tpu_custom_call.1} parent=1 // loop_pre_header
      _
    $region3: #{tpu_custom_call.1} parent=1 // loop_header
      %s19 = sphi 0, %s23
      %p20 = scmp.ge.s32.totalorder %s19, 4
      %s26 = sphi 0, %s38
      %s27 = sphi 0, %s34
      %s28 = sphi 0, %s26
      %s29 = sphi 0, %s27
      %s30 = sphi 0, %s28
      %s31 = sphi 0, %s29
      %s43 = sphi 0, %s45
      %s46 = sphi 0, %s43
      %s47 = sphi 0, %s46
      %s63 = sphi 0, %s47
      %s71 = sphi 0, %s73
      %s74 = sphi 0, %s71
      %s75 = sphi 0, %s74
      %s91 = sphi 0, %s75
      %s97 = sphi 0, %s99
      %s100 = sphi 0, %s97
      %s101 = sphi 0, %s100
      %s117 = sphi 0, %s101
      %s123 = sphi 0, %s125
      %s126 = sphi 0, %s123
      %s127 = sphi 0, %s126
      %s143 = sphi 0, %s127
      %s149 = sphi 0, %s151
      %s152 = sphi 0, %s149
      %s153 = sphi 0, %s152
      %s169 = sphi 0, %s153
    $region4: #{tpu_custom_call.1} parent=1 // loop_header_branch
      %22 = sbr.rel (%p20) target = $region8
    $region5: #{tpu_custom_call.1} parent=1 // loop_body
      %s24 = ssub.s32 %s19, 1
      %s25 = ssub.s32 %s19, 2
      %s32 = sadd.s32 1, %s27
      %p33 = scmp.ge.s32.totalorder %s32, 1
      %s34 = scalar_select %p33, 0, %s32
      %s35 = sadd.s32 1, %s26
      %s36 = scalar_select %p33, %s35, %s26
      %p37 = scmp.ge.s32.totalorder %s36, 2
      %s38 = scalar_select %p37, 0, %s36
      %s39 = ssub.s32 %s26, %s38
      %s40 = ssub.s32 %s27, %s34
      %s41 = sor.u32 %s39, %s40
      %p42 = scmp.eq.s32.totalorder %s41, 0
      %s44 = sadd.s32 %s43, 1
      %s45 = scalar_select %p42, %s43, %s44
      %p48 = pneg %p42
      %p49 = scmp.eq.s32.totalorder %s19, 1
      %p50 = por %p48, %p49
      %p51 = scmp.ne.s32.totalorder %s43, %s46
      %p52 = scmp.eq.s32.totalorder %s19, 0
      %p53 = por %p51, %p52
      %p54 = scmp.ne.s32.totalorder %s43, %s46
      %p55 = scmp.eq.s32.totalorder %s24, 1
      %p56 = por %p54, %p55
      %p57 = scmp.ne.s32.totalorder %s46, %s47
      %p58 = scmp.eq.s32.totalorder %s24, 0
      %p59 = por %p57, %p58
      %p60 = scmp.ne.s32.totalorder %s46, %s47
      %p61 = scmp.eq.s32.totalorder %s25, 1
      %p62 = por %p60, %p61
      %p64 = scmp.ne.s32.totalorder %s47, %s63
      %p65 = scmp.eq.s32.totalorder %s25, 0
      %p66 = por %p64, %p65
      %s67 = ssub.s32 %s26, %s38
      %s68 = ssub.s32 %s27, %s34
      %s69 = sor.u32 %s67, %s68
      %p70 = scmp.eq.s32.totalorder %s69, 0
      %s72 = sadd.s32 %s71, 1
      %s73 = scalar_select %p70, %s71, %s72
      %p76 = pneg %p70
      %p77 = scmp.eq.s32.totalorder %s19, 1
      %p78 = por %p76, %p77
      %p79 = scmp.ne.s32.totalorder %s71, %s74
      %p80 = scmp.eq.s32.totalorder %s19, 0
      %p81 = por %p79, %p80
      %p82 = scmp.ne.s32.totalorder %s71, %s74
      %p83 = scmp.eq.s32.totalorder %s24, 1
      %p84 = por %p82, %p83
      %p85 = scmp.ne.s32.totalorder %s74, %s75
      %p86 = scmp.eq.s32.totalorder %s24, 0
      %p87 = por %p85, %p86
      %p88 = scmp.ne.s32.totalorder %s74, %s75
      %p89 = scmp.eq.s32.totalorder %s25, 1
      %p90 = por %p88, %p89
      %p92 = scmp.ne.s32.totalorder %s75, %s91
      %p93 = scmp.eq.s32.totalorder %s25, 0
      %p94 = por %p92, %p93
      %s95 = ssub.s32 %s26, %s38
      %p96 = scmp.eq.s32.totalorder %s95, 0
      %s98 = sadd.s32 %s97, 1
      %s99 = scalar_select %p96, %s97, %s98
      %p102 = pneg %p96
      %p103 = scmp.eq.s32.totalorder %s19, 1
      %p104 = por %p102, %p103
      %p105 = scmp.ne.s32.totalorder %s97, %s100
      %p106 = scmp.eq.s32.totalorder %s19, 0
      %p107 = por %p105, %p106
      %p108 = scmp.ne.s32.totalorder %s97, %s100
      %p109 = scmp.eq.s32.totalorder %s24, 1
      %p110 = por %p108, %p109
      %p111 = scmp.ne.s32.totalorder %s100, %s101
      %p112 = scmp.eq.s32.totalorder %s24, 0
      %p113 = por %p111, %p112
      %p114 = scmp.ne.s32.totalorder %s100, %s101
      %p115 = scmp.eq.s32.totalorder %s25, 1
      %p116 = por %p114, %p115
      %p118 = scmp.ne.s32.totalorder %s101, %s117
      %p119 = scmp.eq.s32.totalorder %s25, 0
      %p120 = por %p118, %p119
      %s121 = ssub.s32 %s26, %s38
      %p122 = scmp.eq.s32.totalorder %s121, 0
      %s124 = sadd.s32 %s123, 1
      %s125 = scalar_select %p122, %s123, %s124
      %p128 = pneg %p122
      %p129 = scmp.eq.s32.totalorder %s19, 1
      %p130 = por %p128, %p129
      %p131 = scmp.ne.s32.totalorder %s123, %s126
      %p132 = scmp.eq.s32.totalorder %s19, 0
      %p133 = por %p131, %p132
      %p134 = scmp.ne.s32.totalorder %s123, %s126
      %p135 = scmp.eq.s32.totalorder %s24, 1
      %p136 = por %p134, %p135
      %p137 = scmp.ne.s32.totalorder %s126, %s127
      %p138 = scmp.eq.s32.totalorder %s24, 0
      %p139 = por %p137, %p138
      %p140 = scmp.ne.s32.totalorder %s126, %s127
      %p141 = scmp.eq.s32.totalorder %s25, 1
      %p142 = por %p140, %p141
      %p144 = scmp.ne.s32.totalorder %s127, %s143
      %p145 = scmp.eq.s32.totalorder %s25, 0
      %p146 = por %p144, %p145
      %s147 = ssub.s32 %s26, %s38
      %p148 = scmp.eq.s32.totalorder %s147, 0
      %s150 = sadd.s32 %s149, 1
      %s151 = scalar_select %p148, %s149, %s150
      %p154 = pneg %p148
      %p155 = scmp.eq.s32.totalorder %s19, 1
      %p156 = por %p154, %p155
      %p157 = scmp.ne.s32.totalorder %s149, %s152
      %p158 = scmp.eq.s32.totalorder %s19, 0
      %p159 = por %p157, %p158
      %p160 = scmp.ne.s32.totalorder %s149, %s152
      %p161 = scmp.eq.s32.totalorder %s24, 1
      %p162 = por %p160, %p161
      %p163 = scmp.ne.s32.totalorder %s152, %s153
      %p164 = scmp.eq.s32.totalorder %s24, 0
      %p165 = por %p163, %p164
      %p166 = scmp.ne.s32.totalorder %s152, %s153
      %p167 = scmp.eq.s32.totalorder %s25, 1
      %p168 = por %p166, %p167
      %p170 = scmp.ne.s32.totalorder %s153, %s169
      %p171 = scmp.eq.s32.totalorder %s25, 0
      %p172 = por %p170, %p171
      %p173 = scmp.le.s32.totalorder 1, %s19
      %p174 = scmp.lt.s32.totalorder %s19, 3
      %p175 = pnand %p173, %p174
      %p176 = pneg %p175
      // Predicated region
      $region9: #{tpu_custom_call.1} parent=5 // pred_check
        _
      $region10: #{tpu_custom_call.1} parent=5 // pred_check_branch
        %178 = sbr.rel (%p175) target = $region12
      $region11: #{tpu_custom_call.1} parent=5 // pred_region
        %s179 = ssub.s32 %s19, 1
      $region12: #{tpu_custom_call.1} parent=5 // pred_fallthru
        _
      %p180 = scmp.lt.s32.totalorder %s19, 2
      // Predicated region
      $region13: #{tpu_custom_call.1} parent=5 // pred_check
        %p181 = pneg %p180
      $region14: #{tpu_custom_call.1} parent=5 // pred_check_branch
        %183 = sbr.rel (%p181) target = $region16
      $region15: #{tpu_custom_call.1} parent=5 // pred_region
        // Predicated region
        $region17: #{tpu_custom_call.1} parent=15 // pred_check
          %p184 = pneg %p53
        $region18: #{tpu_custom_call.1} parent=15 // pred_check_branch
          %186 = sbr.rel (%p184) target = $region20
        $region19: #{tpu_custom_call.1} parent=15 // pred_region
          %s187 = sand.u32 %s43, 1
          %s188 = scalar_lea.sflag [#allocation5], %s187
          %s189 = sand.u32 %s43, 1
          %s190 = smul.addr %s189, 8
          %s191 = scalar_lea.vmem [#allocation4], %s190
          %s193 = ssub.s32 128, 128
          %194 = vsyncadd %s188, %s193
          %s195 = sadd.s32 %s27, %s26
          %s196 = smul.addr %s195, 128
          %s197 = scalar_lea.hbm %s1, %s196
          %s199 = sshll.u32 %s191, 4
          %s200 = int_to_ptr.vmem [resolvable:$true] %s199
          %202 = dma.hbm_to_vmem [thread:$0]  %s197, 128, %s200, %s188
        $region20: #{tpu_custom_call.1} parent=15 // pred_fallthru
          _
        // Predicated region
        $region21: #{tpu_custom_call.1} parent=15 // pred_check
          %p203 = pneg %p81
        $region22: #{tpu_custom_call.1} parent=15 // pred_check_branch
          %205 = sbr.rel (%p203) target = $region24
        $region23: #{tpu_custom_call.1} parent=15 // pred_region
          %s206 = sand.u32 %s71, 1
          %s207 = scalar_lea.sflag [#allocation7], %s206
          %s208 = sand.u32 %s71, 1
          %s209 = smul.addr %s208, 8
          %s210 = scalar_lea.vmem [#allocation6], %s209
          %s212 = ssub.s32 128, 128
          %213 = vsyncadd %s207, %s212
          %s214 = sadd.s32 %s27, %s26
          %s215 = smul.addr %s214, 128
          %s216 = scalar_lea.hbm %s2, %s215
          %s218 = sshll.u32 %s210, 4
          %s219 = int_to_ptr.vmem [resolvable:$true] %s218
          %221 = dma.hbm_to_vmem [thread:$0]  %s216, 128, %s219, %s207
        $region24: #{tpu_custom_call.1} parent=15 // pred_fallthru
          _
      $region16: #{tpu_custom_call.1} parent=5 // pred_fallthru
        _
      %p222 = scmp.le.s32.totalorder 1, %s19
      %p223 = scmp.lt.s32.totalorder %s19, 3
      %p224 = pnand %p222, %p223
      %p225 = pneg %p224
      // Predicated region
      $region25: #{tpu_custom_call.1} parent=5 // pred_check
        _
      $region26: #{tpu_custom_call.1} parent=5 // pred_check_branch
        %227 = sbr.rel (%p224) target = $region28
      $region27: #{tpu_custom_call.1} parent=5 // pred_region
        %s228 = ssub.s32 %s19, 1
        %s229 = sand.u32 %s46, 1
        %s230 = scalar_lea.sflag [#allocation5], %s229
        %s231 = sand.u32 %s46, 1
        %s232 = smul.addr %s231, 8
        %s233 = scalar_lea.vmem [#allocation4], %s232
        // Predicated region
        $region29: #{tpu_custom_call.1} parent=27 // pred_check
          %p234 = pneg %p59
        $region30: #{tpu_custom_call.1} parent=27 // pred_check_branch
          %236 = sbr.rel (%p234) target = $region32
        $region31: #{tpu_custom_call.1} parent=27 // pred_region
          %237 = dma.done %s230, 128
        $region32: #{tpu_custom_call.1} parent=27 // pred_fallthru
          _
        %s238 = sand.u32 %s74, 1
        %s239 = scalar_lea.sflag [#allocation7], %s238
        %s240 = sand.u32 %s74, 1
        %s241 = smul.addr %s240, 8
        %s242 = scalar_lea.vmem [#allocation6], %s241
        // Predicated region
        $region33: #{tpu_custom_call.1} parent=27 // pred_check
          %p243 = pneg %p87
        $region34: #{tpu_custom_call.1} parent=27 // pred_check_branch
          %245 = sbr.rel (%p243) target = $region36
        $region35: #{tpu_custom_call.1} parent=27 // pred_region
          %246 = dma.done %s239, 128
        $region36: #{tpu_custom_call.1} parent=27 // pred_fallthru
          _
        %s247 = sand.u32 %s46, 1
        %s248 = scalar_lea.sflag [#allocation5], %s247
        %s249 = sand.u32 %s46, 1
        %s250 = smul.addr %s249, 8
        %s251 = scalar_lea.vmem [#allocation4], %s250
        %p252 = pneg %p59
        %p253 = pneg %p56
        %s254 = sand.u32 %s74, 1
        %s255 = scalar_lea.sflag [#allocation7], %s254
        %s256 = sand.u32 %s74, 1
        %s257 = smul.addr %s256, 8
        %s258 = scalar_lea.vmem [#allocation6], %s257
        %p259 = pneg %p87
        %p260 = pneg %p84
        %p261 = pneg %p113
        %p262 = pneg %p110
        %p263 = scmp.lt.s32.totalorder %s28, 1
        %s264 = scalar_select %p263, %s28, 1
        %s265 = smul.addr %s264, 8
        %s266 = scalar_lea.vmem %s3, %s265
        %p267 = pneg %p139
        %p268 = pneg %p136
        %p269 = scmp.lt.s32.totalorder %s28, 1
        %s270 = scalar_select %p269, %s28, 1
        %s271 = smul.addr %s270, 8
        %s272 = scalar_lea.vmem %s4, %s271
        %p273 = pneg %p165
        %p274 = pneg %p162
        %p275 = scmp.lt.s32.totalorder %s28, 1
        %s276 = scalar_select %p275, %s28, 1
        %s277 = smul.addr %s276, 8
        %s278 = scalar_lea.vmem %s5, %s277
        %p279 = scmp.lt.s32.totalorder %s28, 1
        %s280 = scalar_select %p279, %s28, 1
        %s281 = smul.addr %s280, 8
        %s282 = scalar_lea.vmem %s3, %s281
        %p283 = scmp.lt.s32.totalorder %s28, 1
        %s284 = scalar_select %p283, %s28, 1
        %s285 = smul.addr %s284, 8
        %s286 = scalar_lea.vmem %s4, %s285
        %p287 = scmp.lt.s32.totalorder %s28, 1
        %s288 = scalar_select %p287, %s28, 1
        %s289 = smul.addr %s288, 8
        %s290 = scalar_lea.vmem %s5, %s289
        %p291 = scmp.eq.s32.totalorder %s29, 0
        // Predicated region
        $region37: #{tpu_custom_call.1} parent=27 // pred_check
          %p292 = pneg %p291
        $region38: #{tpu_custom_call.1} parent=27 // pred_check_branch
          %294 = sbr.rel (%p292) target = $region40
        $region39: #{tpu_custom_call.1} parent=27 // pred_region
          %vm295 = vcmask 7168
          %296 = vst.msk [vmem:[%s282] sm:$0xff] %vm295, 0.0
          %297 = vst.msk [vmem:[%s286] sm:$0xff] %vm295, 0.0
          %298 = vst.msk [vmem:[%s290] sm:$0xff] %vm295, 0.0
        $region40: #{tpu_custom_call.1} parent=27 // pred_fallthru
          _
        %s299 = sld [smem:[#allocation3]]
        %v300 = vld [vmem:[%s233] sm:$0xff]
        %v301 = vld [vmem:[%s242] sm:$0xff]
        %v302 = vand.u32 2147483647, %v300
        %v303 = vsub.f32 0.0, %v302
        %v304 = vmul.f32 %v303, 1.442695
        %v305 = vpow.pop %v304
        %v306 = vsub.f32 0.0, %v300
        %v307 = vmax.f32 %v306, 0.0
        %v308 = vadd.f32 %v305, 1.0
        %v309 = vlog2.pop %v308
        %v310 = vmul.f32 %v309, 0.6931472
        %v311 = vmul.f32 -0.5, %v305
        %v312 = vadd.f32 %v311, 1.0
        %v313 = vmul.f32 %v312, %v305
        %v314 = vand.u32 2147483647, %v305
        %vm315 = vcmp.lt.f32.partialorder %v314, 0.0004427343
        %v316 = vsel %vm315, %v313, %v310
        %v317 = vadd.f32 %v307, %v316
        %v318 = vsub.f32 1.0, %v301
        %v319 = vmul.f32 %v318, %v300
        %v320 = vstv %s299
        %v321 = vmul.f32 %v320, %v301
        %v322 = vadd.f32 %v321, 1.0
        %v323 = vmul.f32 %v322, %v317
        %v324 = vadd.f32 %v319, %v323
        %v325 = vsub.f32 0.0, %v317
        %v326 = vmul.f32 %v325, 1.442695
        %v327 = vpow.pop %v326
        %v328 = vld [vmem:[%s282] sm:$0xff]
        %329 = vadd.xlane.f32.xlu0 %v324
        %v330 = vpop.xlane.xlu0 %329
        %v331 = vadd.f32 %v328, %v330
        %vm332 = vcmask 7168
        %333 = vst.msk [vmem:[%s282] sm:$0xff] %vm332, %v331
        %v334 = vld [vmem:[%s286] sm:$0xff]
        %v335 = vmul.f32 %v327, %v301
        %336 = vadd.xlane.f32.xlu0 %v335
        %v337 = vpop.xlane.xlu0 %336
        %v338 = vadd.f32 %v334, %v337
        %339 = vst.msk [vmem:[%s286] sm:$0xff] %vm332, %v338
        %v340 = vld [vmem:[%s290] sm:$0xff]
        %v341 = vadd.f32 %v327, %v301
        %342 = vadd.xlane.f32.xlu0 %v341
        %v343 = vpop.xlane.xlu0 %342
        %v344 = vadd.f32 %v340, %v343
        %345 = vst.msk [vmem:[%s290] sm:$0xff] %vm332, %v344
        %p346 = scmp.lt.s32.totalorder %s28, 1
        %s347 = scalar_select %p346, %s28, 1
        %s348 = smul.addr %s347, 8
        %s349 = scalar_lea.vmem %s3, %s348
        %p350 = scmp.lt.s32.totalorder %s28, 1
        %s351 = scalar_select %p350, %s28, 1
        %s352 = smul.addr %s351, 8
        %s353 = scalar_lea.vmem %s4, %s352
        %p354 = scmp.lt.s32.totalorder %s28, 1
        %s355 = scalar_select %p354, %s28, 1
        %s356 = smul.addr %s355, 8
        %s357 = scalar_lea.vmem %s5, %s356
        // Predicated region
        $region41: #{tpu_custom_call.1} parent=27 // pred_check
          %p358 = pneg %p110
        $region42: #{tpu_custom_call.1} parent=27 // pred_check_branch
          %360 = sbr.rel (%p358) target = $region44
        $region43: #{tpu_custom_call.1} parent=27 // pred_region
          _
        $region44: #{tpu_custom_call.1} parent=27 // pred_fallthru
          _
        // Predicated region
        $region45: #{tpu_custom_call.1} parent=27 // pred_check
          %p361 = pneg %p136
        $region46: #{tpu_custom_call.1} parent=27 // pred_check_branch
          %363 = sbr.rel (%p361) target = $region48
        $region47: #{tpu_custom_call.1} parent=27 // pred_region
          _
        $region48: #{tpu_custom_call.1} parent=27 // pred_fallthru
          _
        // Predicated region
        $region49: #{tpu_custom_call.1} parent=27 // pred_check
          %p364 = pneg %p162
        $region50: #{tpu_custom_call.1} parent=27 // pred_check_branch
          %366 = sbr.rel (%p364) target = $region52
        $region51: #{tpu_custom_call.1} parent=27 // pred_region
          _
        $region52: #{tpu_custom_call.1} parent=27 // pred_fallthru
          _
      $region28: #{tpu_custom_call.1} parent=5 // pred_fallthru
        _
      %p367 = scmp.le.s32.totalorder 2, %s19
      // Predicated region
      $region53: #{tpu_custom_call.1} parent=5 // pred_check
        %p368 = pneg %p367
      $region54: #{tpu_custom_call.1} parent=5 // pred_check_branch
        %370 = sbr.rel (%p368) target = $region56
      $region55: #{tpu_custom_call.1} parent=5 // pred_region
        %s371 = ssub.s32 %s19, 2
        // Predicated region
        $region57: #{tpu_custom_call.1} parent=55 // pred_check
          %p372 = pneg %p116
        $region58: #{tpu_custom_call.1} parent=55 // pred_check_branch
          %374 = sbr.rel (%p372) target = $region60
        $region59: #{tpu_custom_call.1} parent=55 // pred_region
          %p375 = scmp.lt.s32.totalorder %s30, 1
          %s376 = scalar_select %p375, %s30, 1
          %s377 = smul.addr %s376, 8
          %s378 = scalar_lea.vmem %s3, %s377
        $region60: #{tpu_custom_call.1} parent=55 // pred_fallthru
          _
        // Predicated region
        $region61: #{tpu_custom_call.1} parent=55 // pred_check
          %p379 = pneg %p142
        $region62: #{tpu_custom_call.1} parent=55 // pred_check_branch
          %381 = sbr.rel (%p379) target = $region64
        $region63: #{tpu_custom_call.1} parent=55 // pred_region
          %p382 = scmp.lt.s32.totalorder %s30, 1
          %s383 = scalar_select %p382, %s30, 1
          %s384 = smul.addr %s383, 8
          %s385 = scalar_lea.vmem %s4, %s384
        $region64: #{tpu_custom_call.1} parent=55 // pred_fallthru
          _
        // Predicated region
        $region65: #{tpu_custom_call.1} parent=55 // pred_check
          %p386 = pneg %p168
        $region66: #{tpu_custom_call.1} parent=55 // pred_check_branch
          %388 = sbr.rel (%p386) target = $region68
        $region67: #{tpu_custom_call.1} parent=55 // pred_region
          %p389 = scmp.lt.s32.totalorder %s30, 1
          %s390 = scalar_select %p389, %s30, 1
          %s391 = smul.addr %s390, 8
          %s392 = scalar_lea.vmem %s5, %s391
        $region68: #{tpu_custom_call.1} parent=55 // pred_fallthru
          _
      $region56: #{tpu_custom_call.1} parent=5 // pred_fallthru
        _
    $region6: #{tpu_custom_call.1} parent=1 // loop_footer
      %s23 = sadd.s32 1, %s19
    $region7: #{tpu_custom_call.1} parent=1 // loop_footer_branch
      %18 = sbr.rel target = $region3
    $region8: #{tpu_custom_call.1} parent=1 // loop_exit
      _
    %393 = vsyncpa [#allocation5], 1
    %s394 = scalar_lea.sflag [#allocation5], 1
    %395 = vsyncpa %s394, 1
    %396 = vsyncpa [#allocation7], 1
    %s397 = scalar_lea.sflag [#allocation7], 1
    %398 = vsyncpa %s397, 1

</llo_original>
